<compile_context>
chip_gen: v5e
topology: v5e:2x2
jax: 0.10.0
libtpu: 0.0.40
codegen_flags: <defaults>
</compile_context>

<pallas_src>
import math
import functools

import jax
import jax.numpy as jnp
from jax import lax
from jax.experimental import pallas as pl
from jax.experimental.pallas import tpu as pltpu


_CONTRACT_LAST = (((1,), (1,)), ((), ()))   # contract last dim of both operands


def _noisy_linear_kernel(x_ref, mu_w_ref, sig_w_ref, eps_i_ref, eps_j_ref,
                         mu_b_ref, sig_b_ref, o_ref, acc_ref, *, precision):
    k = pl.program_id(2)

    @pl.when(k == 0)
    def _():
        acc_ref[...] = jnp.zeros_like(acc_ref)

    x = x_ref[...]                                   # (tm, tk)
    eps_j = eps_j_ref[...]                           # (1, tn)

    # Rank-1 algebraic form: no (tn, tk) noisy-weight temp is built.
    part = lax.dot_general(x, mu_w_ref[...], _CONTRACT_LAST,
                           precision=precision,
                           preferred_element_type=jnp.float32)
    part += eps_j * lax.dot_general(x * eps_i_ref[...], sig_w_ref[...],
                                    _CONTRACT_LAST, precision=precision,
                                    preferred_element_type=jnp.float32)
    acc_ref[...] += part

    @pl.when(k == pl.num_programs(2) - 1)
    def _():
        b = mu_b_ref[...] + sig_b_ref[...] * eps_j   # bias_epsilon == eps_j
        o_ref[...] = (acc_ref[...] + b).astype(o_ref.dtype)


def _biased_matmul_kernel(x_ref, w_ref, b_ref, o_ref, acc_ref, *, precision):
    k = pl.program_id(2)

    @pl.when(k == 0)
    def _():
        acc_ref[...] = jnp.zeros_like(acc_ref)

    acc_ref[...] += lax.dot_general(x_ref[...], w_ref[...], _CONTRACT_LAST,
                                    precision=precision,
                                    preferred_element_type=jnp.float32)

    @pl.when(k == pl.num_programs(2) - 1)
    def _():
        o_ref[...] = (acc_ref[...] + b_ref[...]).astype(o_ref.dtype)


def _pad_to(n, m):
    return ((n + m - 1) // m) * m


def _choose_tiles(batch, n_out, n_in, tm, tn, tk):
    """Clamp tiles to the (padded) problem and keep (8, 128) alignment."""
    B8, N128, K128 = _pad_to(batch, 8), _pad_to(n_out, 128), _pad_to(n_in, 128)
    tm = min(tm, B8)            # cover the whole batch in one i tile when small
    tn = min(tn, N128)
    tk = min(tk, K128)
    B_p = _pad_to(batch, tm)
    # v7x has 2 TensorCores: ensure at least one "parallel" axis has >= 2 blocks
    # so the second core isn't idle (no cost on single-TC v5e/v6e).
    if B_p // tm == 1 and N128 // tn < 2 and N128 >= 256:
        tn = max(128, ((N128 // 2) // 128) * 128)
    N_p = _pad_to(n_out, tn)
    K_p = _pad_to(n_in, tk)
    return tm, tn, tk, B_p, N_p, K_p


@functools.partial(jax.jit, static_argnames=("tm", "tn", "tk", "precision"))
def noisy_layer_forward(x, mu_w, sigma_w, mu_b, sigma_b, eps_i, eps_j,
                        *, tm=512, tn=512, tk=512,
                        precision=lax.Precision.HIGHEST):
    """Fused NoisyLayer forward with per-call factorized noise.

    x: (batch, n_in); mu_w/sigma_w: (n_out, n_in); mu_b/sigma_b/eps_j: (n_out,);
    eps_i: (n_in,).  Returns (batch, n_out) f32.  bias_epsilon == eps_j.
    """
    batch, n_in = x.shape
    n_out = mu_w.shape[0]
    tm, tn, tk, B_p, N_p, K_p = _choose_tiles(batch, n_out, n_in, tm, tn, tk)

    # Zero-pad to lane/tile-aligned shapes (padded rows/cols are 0, so padded
    # output entries only contain the bias and are sliced away at the end).
    x_p = jnp.pad(x, ((0, B_p - batch), (0, K_p - n_in)))
    mu_w_p = jnp.pad(mu_w, ((0, N_p - n_out), (0, K_p - n_in)))
    sig_w_p = jnp.pad(sigma_w, ((0, N_p - n_out), (0, K_p - n_in)))
    eps_i_p = jnp.pad(eps_i, (0, K_p - n_in)).reshape(1, K_p)
    eps_j_p = jnp.pad(eps_j, (0, N_p - n_out)).reshape(1, N_p)
    mu_b_p = jnp.pad(mu_b, (0, N_p - n_out)).reshape(1, N_p)
    sig_b_p = jnp.pad(sigma_b, (0, N_p - n_out)).reshape(1, N_p)

    grid = (B_p // tm, N_p // tn, K_p // tk)
    gi, gj, gk = grid

    flops = int(4 * B_p * N_p * K_p          # two MXU matmuls
                + B_p * K_p * gj             # x * eps_i (per j tile)
                + 2 * B_p * N_p * gk)        # eps_j scale + accumulate
    bytes_accessed = int(4 * (B_p * K_p * gj          # x streamed once per j tile
                              + 2 * N_p * K_p * gi    # mu_w + sigma_w per i tile
                              + B_p * N_p             # output
                              + K_p * gi * gj         # eps_i
                              + 3 * N_p * gi * gk))   # eps_j, mu_b, sigma_b

    out_p = pl.pallas_call(
        functools.partial(_noisy_linear_kernel, precision=precision),
        out_shape=jax.ShapeDtypeStruct((B_p, N_p), jnp.float32),
        grid_spec=pltpu.PrefetchScalarGridSpec(
            num_scalar_prefetch=0,
            grid=grid,
            in_specs=[
                pl.BlockSpec((tm, tk), lambda i, j, k: (i, k)),   # x
                pl.BlockSpec((tn, tk), lambda i, j, k: (j, k)),   # mu_w
                pl.BlockSpec((tn, tk), lambda i, j, k: (j, k)),   # sigma_w
                pl.BlockSpec((1, tk), lambda i, j, k: (0, k)),    # eps_i (row)
                pl.BlockSpec((1, tn), lambda i, j, k: (0, j)),    # eps_j (lane-dense row)
                pl.BlockSpec((1, tn), lambda i, j, k: (0, j)),    # mu_b
                pl.BlockSpec((1, tn), lambda i, j, k: (0, j)),    # sigma_b
            ],
            out_specs=pl.BlockSpec((tm, tn), lambda i, j, k: (i, j)),
            scratch_shapes=[pltpu.VMEM((tm, tn), jnp.float32)],
        ),
        compiler_params=pltpu.CompilerParams(
            dimension_semantics=("parallel", "parallel", "arbitrary")),
        cost_estimate=pl.CostEstimate(
            flops=flops, transcendentals=0, bytes_accessed=bytes_accessed),
    )(x_p, mu_w_p, sig_w_p, eps_i_p, eps_j_p, mu_b_p, sig_b_p)

    return out_p[:batch, :n_out]


def make_effective_params(mu_w, sigma_w, mu_b, sigma_b, eps_i, eps_j):
    """Fold factorized noise into the weights once per reset_noise()."""
    w_eff = mu_w + sigma_w * jnp.outer(eps_j, eps_i)
    b_eff = mu_b + sigma_b * eps_j
    return w_eff, b_eff


@functools.partial(jax.jit, static_argnames=("tm", "tn", "tk", "precision"))
def noisy_layer_forward_cached(x, w_eff, b_eff, *, tm=512, tn=512, tk=512,
                               precision=lax.Precision.HIGHEST):
    """Biased matmul with precomputed effective weights (single weight stream)."""
    batch, n_in = x.shape
    n_out = w_eff.shape[0]
    tm, tn, tk, B_p, N_p, K_p = _choose_tiles(batch, n_out, n_in, tm, tn, tk)

    x_p = jnp.pad(x, ((0, B_p - batch), (0, K_p - n_in)))
    w_p = jnp.pad(w_eff, ((0, N_p - n_out), (0, K_p - n_in)))
    b_p = jnp.pad(b_eff, (0, N_p - n_out)).reshape(1, N_p)

    grid = (B_p // tm, N_p // tn, K_p // tk)
    gi, gj, gk = grid
    flops = int(2 * B_p * N_p * K_p + B_p * N_p * gk)
    bytes_accessed = int(4 * (B_p * K_p * gj + N_p * K_p * gi + B_p * N_p
                              + N_p * gi * gk))

    out_p = pl.pallas_call(
        functools.partial(_biased_matmul_kernel, precision=precision),
        out_shape=jax.ShapeDtypeStruct((B_p, N_p), jnp.float32),
        grid_spec=pltpu.PrefetchScalarGridSpec(
            num_scalar_prefetch=0,
            grid=grid,
            in_specs=[
                pl.BlockSpec((tm, tk), lambda i, j, k: (i, k)),   # x
                pl.BlockSpec((tn, tk), lambda i, j, k: (j, k)),   # w_eff
                pl.BlockSpec((1, tn), lambda i, j, k: (0, j)),    # b_eff
            ],
            out_specs=pl.BlockSpec((tm, tn), lambda i, j, k: (i, j)),
            scratch_shapes=[pltpu.VMEM((tm, tn), jnp.float32)],
        ),
        compiler_params=pltpu.CompilerParams(
            dimension_semantics=("parallel", "parallel", "arbitrary")),
        cost_estimate=pl.CostEstimate(
            flops=flops, transcendentals=0, bytes_accessed=bytes_accessed),
    )(x_p, w_p, b_p)

    return out_p[:batch, :n_out]


def _f(x):
    # f(x) = sign(x) * sqrt(|x|)  (factorized-noise transform)
    return jnp.sign(x) * jnp.sqrt(jnp.abs(x))


def init_noisy_layer(key, n_inputs, n_outputs):
    """Parameter init mirroring NoisyLayer.__init__ + reset_noise()."""
    k_mw, k_mb, k_ei, k_ej = jax.random.split(key, 4)
    bound = 1.0 / math.sqrt(n_inputs)
    mu_w = jax.random.uniform(k_mw, (n_outputs, n_inputs), jnp.float32, -bound, bound)
    sigma_w = jnp.full((n_outputs, n_inputs), 0.5 / math.sqrt(n_inputs), jnp.float32)
    mu_b = jax.random.uniform(k_mb, (n_outputs,), jnp.float32, -bound, bound)
    sigma_b = jnp.full((n_outputs,), 0.5 / math.sqrt(n_outputs), jnp.float32)
    # TODO(synk): reset_noise()'s buffer mutation has no in-kernel equivalent;
    # the noise factors are (re)drawn host-side and passed in.
    eps_i = _f(jax.random.normal(k_ei, (n_inputs,), jnp.float32))
    eps_j = _f(jax.random.normal(k_ej, (n_outputs,), jnp.float32))
    return dict(mu_w=mu_w, sigma_w=sigma_w, mu_b=mu_b, sigma_b=sigma_b,
                eps_i=eps_i, eps_j=eps_j)


def _reference(x, p):
    w_eff = p["mu_w"] + p["sigma_w"] * jnp.outer(p["eps_j"], p["eps_i"])
    b_eff = p["mu_b"] + p["sigma_b"] * p["eps_j"]
    return x @ w_eff.T + b_eff


if __name__ == "__main__":
    key = jax.random.PRNGKey(0)

    # --- Test 1: module-sized small case (single tile, single k step). ---
    k_params, k_x, key = jax.random.split(key, 3)
    batch, n_in, n_out = 8, 32, 16
    p = init_noisy_layer(k_params, n_in, n_out)
    x = jax.random.normal(k_x, (batch, n_in), jnp.float32)

    y = jax.block_until_ready(noisy_layer_forward(
        x, p["mu_w"], p["sigma_w"], p["mu_b"], p["sigma_b"],
        p["eps_i"], p["eps_j"]))
    y_ref = _reference(x, p)
    assert y.shape == (batch, n_out)
    assert jnp.allclose(y, y_ref, atol=1e-5, rtol=1e-5)

    # Cached path: noise folded into w_eff/b_eff once per reset_noise().
    w_eff, b_eff = make_effective_params(p["mu_w"], p["sigma_w"], p["mu_b"],
                                         p["sigma_b"], p["eps_i"], p["eps_j"])
    y_c = jax.block_until_ready(noisy_layer_forward_cached(x, w_eff, b_eff))
    assert jnp.allclose(y_c, y_ref, atol=1e-5, rtol=1e-5)

    # --- Test 2: exercise multi-block accumulation (grid = (1, 2, 2)). ---
    k_params2, k_x2, key = jax.random.split(key, 3)
    batch2, n_in2, n_out2 = 8, 256, 256
    p2 = init_noisy_layer(k_params2, n_in2, n_out2)
    x2 = jax.random.normal(k_x2, (batch2, n_in2), jnp.float32)
    y2 = jax.block_until_ready(noisy_layer_forward(
        x2, p2["mu_w"], p2["sigma_w"], p2["mu_b"], p2["sigma_b"],
        p2["eps_i"], p2["eps_j"], tm=8, tn=128, tk=128))
    y2_ref = _reference(x2, p2)
    assert jnp.allclose(y2, y2_ref, atol=1e-4, rtol=1e-4)

    print("KERNEL_OK")
</pallas_src>

<mosaic_0001>
module attributes {stable_mosaic.version = 11 : i64} {
  func.func @_noisy_linear_kernel(%arg0: i32, %arg1: i32, %arg2: i32, %arg3: memref<8x128xf32, #tpu.memory_space<vmem>>, %arg4: memref<128x128xf32, #tpu.memory_space<vmem>>, %arg5: memref<128x128xf32, #tpu.memory_space<vmem>>, %arg6: memref<1x128xf32, #tpu.memory_space<vmem>>, %arg7: memref<1x128xf32, #tpu.memory_space<vmem>>, %arg8: memref<1x128xf32, #tpu.memory_space<vmem>>, %arg9: memref<1x128xf32, #tpu.memory_space<vmem>>, %arg10: memref<8x128xf32, #tpu.memory_space<vmem>>, %arg11: memref<8x128xf32, #tpu.memory_space<vmem>>) attributes {dimension_semantics = [#tpu.dimension_semantics<parallel>, #tpu.dimension_semantics<parallel>, #tpu.dimension_semantics<arbitrary>], iteration_bounds = array<i64: 1, 1, 1>, scalar_prefetch = 0 : i64, scratch_operands = 1 : i64, tpu.core_type = #tpu.core_type<tc>, window_params = [{transform_indices = @transform_0, window_bounds = array<i64: 8, 128>}, {transform_indices = @transform_1, window_bounds = array<i64: 128, 128>}, {transform_indices = @transform_2, window_bounds = array<i64: 128, 128>}, {transform_indices = @transform_3, window_bounds = array<i64: 1, 128>}, {transform_indices = @transform_4, window_bounds = array<i64: 1, 128>}, {transform_indices = @transform_5, window_bounds = array<i64: 1, 128>}, {transform_indices = @transform_6, window_bounds = array<i64: 1, 128>}, {transform_indices = @transform_7, window_bounds = array<i64: 8, 128>}]} {
    %c0_i32 = arith.constant 0 : i32
    %0 = arith.cmpi eq, %arg2, %c0_i32 : i32
    %1 = arith.extui %0 : i1 to i32
    %c0_i32_0 = arith.constant 0 : i32
    %2 = arith.cmpi ne, %1, %c0_i32_0 : i32
    scf.if %2 {
      %cst_17 = arith.constant 0.000000e+00 : f32
      %21 = vector.broadcast %cst_17 : f32 to vector<8x128xf32>
      %c0_18 = arith.constant 0 : index
      %c0_19 = arith.constant 0 : index
      %22 = vector.load %arg11[%c0_18, %c0_19] : memref<8x128xf32, #tpu.memory_space<vmem>>, vector<8x128xf32>
      tpu.vector_store %arg11[%c0_18, %c0_19], %21 {strides = array<i32>} : memref<8x128xf32, #tpu.memory_space<vmem>>, vector<8x128xf32>,
    } else {
    }
    %c0 = arith.constant 0 : index
    %c0_1 = arith.constant 0 : index
    %3 = vector.load %arg3[%c0, %c0_1] : memref<8x128xf32, #tpu.memory_space<vmem>>, vector<8x128xf32>
    %c0_2 = arith.constant 0 : index
    %c0_3 = arith.constant 0 : index
    %4 = vector.load %arg7[%c0_2, %c0_3] : memref<1x128xf32, #tpu.memory_space<vmem>>, vector<1x128xf32>
    %c0_4 = arith.constant 0 : index
    %c0_5 = arith.constant 0 : index
    %5 = vector.load %arg4[%c0_4, %c0_5] : memref<128x128xf32, #tpu.memory_space<vmem>>, vector<128x128xf32>
    %cst = arith.constant dense<0.000000e+00> : vector<8x128xf32>
    %6 = tpu.matmul %3, %5, %cst {dimension_numbers = #tpu.dot_dimension_numbers<[1], [1], [0], [0], [0, 0, 1, 0], [], []>, precision = #tpu.contract_precision<fp32>} : vector<8x128xf32>, vector<128x128xf32>, vector<8x128xf32> -> vector<8x128xf32>
    %c0_6 = arith.constant 0 : index
    %c0_7 = arith.constant 0 : index
    %7 = vector.load %arg6[%c0_6, %c0_7] : memref<1x128xf32, #tpu.memory_space<vmem>>, vector<1x128xf32>
    %8 = vector.broadcast %7 : vector<1x128xf32> to vector<8x128xf32>
    %9 = arith.mulf %3, %8 : vector<8x128xf32>
    %c0_8 = arith.constant 0 : index
    %c0_9 = arith.constant 0 : index
    %10 = vector.load %arg5[%c0_8, %c0_9] : memref<128x128xf32, #tpu.memory_space<vmem>>, vector<128x128xf32>
    %cst_10 = arith.constant dense<0.000000e+00> : vector<8x128xf32>
    %11 = tpu.matmul %9, %10, %cst_10 {dimension_numbers = #tpu.dot_dimension_numbers<[1], [1], [0], [0], [0, 0, 1, 0], [], []>, precision = #tpu.contract_precision<fp32>} : vector<8x128xf32>, vector<128x128xf32>, vector<8x128xf32> -> vector<8x128xf32>
    %12 = vector.broadcast %4 : vector<1x128xf32> to vector<8x128xf32>
    %13 = arith.mulf %12, %11 : vector<8x128xf32>
    %14 = arith.addf %6, %13 : vector<8x128xf32>
    %c0_11 = arith.constant 0 : index
    %c0_12 = arith.constant 0 : index
    %15 = vector.load %arg11[%c0_11, %c0_12] : memref<8x128xf32, #tpu.memory_space<vmem>>, vector<8x128xf32>
    %16 = arith.addf %15, %14 : vector<8x128xf32>
    %c0_13 = arith.constant 0 : index
    %c0_14 = arith.constant 0 : index
    %17 = vector.load %arg11[%c0_13, %c0_14] : memref<8x128xf32, #tpu.memory_space<vmem>>, vector<8x128xf32>
    tpu.vector_store %arg11[%c0_13, %c0_14], %16 {strides = array<i32>} : memref<8x128xf32, #tpu.memory_space<vmem>>, vector<8x128xf32>,
    %c0_i32_15 = arith.constant 0 : i32
    %18 = arith.cmpi eq, %arg2, %c0_i32_15 : i32
    %19 = arith.extui %18 : i1 to i32
    %c0_i32_16 = arith.constant 0 : i32
    %20 = arith.cmpi ne, %19, %c0_i32_16 : i32
    scf.if %20 {
      %c0_17 = arith.constant 0 : index
      %c0_18 = arith.constant 0 : index
      %21 = vector.load %arg8[%c0_17, %c0_18] : memref<1x128xf32, #tpu.memory_space<vmem>>, vector<1x128xf32>
      %c0_19 = arith.constant 0 : index
      %c0_20 = arith.constant 0 : index
      %22 = vector.load %arg9[%c0_19, %c0_20] : memref<1x128xf32, #tpu.memory_space<vmem>>, vector<1x128xf32>
      %23 = arith.mulf %22, %4 : vector<1x128xf32>
      %24 = arith.addf %21, %23 : vector<1x128xf32>
      %c0_21 = arith.constant 0 : index
      %c0_22 = arith.constant 0 : index
      %25 = vector.load %arg11[%c0_21, %c0_22] : memref<8x128xf32, #tpu.memory_space<vmem>>, vector<8x128xf32>
      %26 = vector.broadcast %24 : vector<1x128xf32> to vector<8x128xf32>
      %27 = arith.addf %25, %26 : vector<8x128xf32>
      %c0_23 = arith.constant 0 : index
      %c0_24 = arith.constant 0 : index
      %28 = vector.load %arg10[%c0_23, %c0_24] : memref<8x128xf32, #tpu.memory_space<vmem>>, vector<8x128xf32>
      tpu.vector_store %arg10[%c0_23, %c0_24], %27 {strides = array<i32>} : memref<8x128xf32, #tpu.memory_space<vmem>>, vector<8x128xf32>,
    } else {
    }
    return
  }
  func.func @transform_0(%arg0: i32, %arg1: i32, %arg2: i32) -> (i32, i32) {
    %c0_i32 = arith.constant 0 : i32
    return %arg0, %arg2 : i32, i32
  }
  func.func @transform_1(%arg0: i32, %arg1: i32, %arg2: i32) -> (i32, i32) {
    %c0_i32 = arith.constant 0 : i32
    return %arg1, %arg2 : i32, i32
  }
  func.func @transform_2(%arg0: i32, %arg1: i32, %arg2: i32) -> (i32, i32) {
    %c0_i32 = arith.constant 0 : i32
    return %arg1, %arg2 : i32, i32
  }
  func.func @transform_3(%arg0: i32, %arg1: i32, %arg2: i32) -> (i32, i32) {
    %c0_i32 = arith.constant 0 : i32
    %c0_i32_0 = arith.constant 0 : i32
    return %c0_i32, %arg2 : i32, i32
  }
  func.func @transform_4(%arg0: i32, %arg1: i32, %arg2: i32) -> (i32, i32) {
    %c0_i32 = arith.constant 0 : i32
    %c0_i32_0 = arith.constant 0 : i32
    return %c0_i32, %arg1 : i32, i32
  }
  func.func @transform_5(%arg0: i32, %arg1: i32, %arg2: i32) -> (i32, i32) {
    %c0_i32 = arith.constant 0 : i32
    %c0_i32_0 = arith.constant 0 : i32
    return %c0_i32, %arg1 : i32, i32
  }
  func.func @transform_6(%arg0: i32, %arg1: i32, %arg2: i32) -> (i32, i32) {
    %c0_i32 = arith.constant 0 : i32
    %c0_i32_0 = arith.constant 0 : i32
    return %c0_i32, %arg1 : i32, i32
  }
  func.func @transform_7(%arg0: i32, %arg1: i32, %arg2: i32) -> (i32, i32) {
    %c0_i32 = arith.constant 0 : i32
    return %arg0, %arg1 : i32, i32
  }
}

</mosaic_0001>

<llo_original>
// kernel: noisy_layer_forward.1
$region0: #{noisy_layer_forward.1}
  #allocation0 [shape = 'u32[]', space=smem, size = 0x4, offset = 0x4, fixed_abs, tag = 'smem constant byte address 0x4 - core index']
  #allocation1 [shape = 'u32[72,128]{1,0:T(1,128)}', space=vmem, size = 0x9000, scoped, tag = 'internal scratch']
  #allocation2 [shape = 'f32[8,128]{1,0:T(8,128)}', space=vmem, size = 0x1000, scoped, tag = 'scratch operand']
  %s0 = inlined_call_operand.vmem [shape: f32[8,128], index: 0, kind: input, shape index: {}]
  %s1 = inlined_call_operand.vmem [shape: f32[128,128], index: 1, kind: input, shape index: {}]
  %s2 = inlined_call_operand.vmem [shape: f32[128,128], index: 2, kind: input, shape index: {}]
  %s3 = inlined_call_operand.vmem [shape: f32[1,128], index: 3, kind: input, shape index: {}]
  %s4 = inlined_call_operand.vmem [shape: f32[1,128], index: 4, kind: input, shape index: {}]
  %s5 = inlined_call_operand.vmem [shape: f32[1,128], index: 5, kind: input, shape index: {}]
  %s6 = inlined_call_operand.vmem [shape: f32[1,128], index: 6, kind: input, shape index: {}]
  %s7 = inlined_call_operand.hbm [shape: f32[8,128], index: 7, kind: output, shape index: {}]
  %s8 = sld [smem:[#allocation0]]
  $region46: #{noisy_layer_forward.1} parent=0
    _
  %s10 = ssub.s32 1, %s8
  %s11 = scalar_select 0, %s10, %s8
  $region1: #{noisy_layer_forward.1} parent=0
    #allocation3 [shape = 'u8[4096]{0}', space=vmem, size = 0x1000, scoped, tag = 'output window, operand 0, single buffered']
    #allocation4 [shape = 's32[1]{0}', space=sflag, size = 0x4, scoped, tag = 'scoped memory for noisy_layer_forward.1']
    %12 = vsyncpa [#allocation4], 0
    // Predicated region
    $region2: #{noisy_layer_forward.1} parent=1 // pred_check
      _
    $region3: #{noisy_layer_forward.1} parent=1 // pred_check_branch
      %14 = sbr.rel (0) target = $region5
    $region4: #{noisy_layer_forward.1} parent=1 // pred_region
      _
    $region5: #{noisy_layer_forward.1} parent=1 // pred_fallthru
      _
    // Predicated region
    $region6: #{noisy_layer_forward.1} parent=1 // pred_check
      _
    $region7: #{noisy_layer_forward.1} parent=1 // pred_check_branch
      %16 = sbr.rel (0) target = $region9
    $region8: #{noisy_layer_forward.1} parent=1 // pred_region
      _
    $region9: #{noisy_layer_forward.1} parent=1 // pred_fallthru
      _
    // Predicated region
    $region10: #{noisy_layer_forward.1} parent=1 // pred_check
      _
    $region11: #{noisy_layer_forward.1} parent=1 // pred_check_branch
      %18 = sbr.rel (0) target = $region13
    $region12: #{noisy_layer_forward.1} parent=1 // pred_region
      _
    $region13: #{noisy_layer_forward.1} parent=1 // pred_fallthru
      _
    // Predicated region
    $region14: #{noisy_layer_forward.1} parent=1 // pred_check
      _
    $region15: #{noisy_layer_forward.1} parent=1 // pred_check_branch
      %20 = sbr.rel (0) target = $region17
    $region16: #{noisy_layer_forward.1} parent=1 // pred_region
      _
    $region17: #{noisy_layer_forward.1} parent=1 // pred_fallthru
      _
    // Predicated region
    $region18: #{noisy_layer_forward.1} parent=1 // pred_check
      _
    $region19: #{noisy_layer_forward.1} parent=1 // pred_check_branch
      %22 = sbr.rel (0) target = $region21
    $region20: #{noisy_layer_forward.1} parent=1 // pred_region
      _
    $region21: #{noisy_layer_forward.1} parent=1 // pred_fallthru
      _
    // Predicated region
    $region22: #{noisy_layer_forward.1} parent=1 // pred_check
      _
    $region23: #{noisy_layer_forward.1} parent=1 // pred_check_branch
      %24 = sbr.rel (0) target = $region25
    $region24: #{noisy_layer_forward.1} parent=1 // pred_region
      _
    $region25: #{noisy_layer_forward.1} parent=1 // pred_fallthru
      _
    // Predicated region
    $region26: #{noisy_layer_forward.1} parent=1 // pred_check
      _
    $region27: #{noisy_layer_forward.1} parent=1 // pred_check_branch
      %26 = sbr.rel (0) target = $region29
    $region28: #{noisy_layer_forward.1} parent=1 // pred_region
      _
    $region29: #{noisy_layer_forward.1} parent=1 // pred_fallthru
      _
    %p27 = scmp.eq.s32.totalorder 0, 0
    // Predicated region
    $region30: #{noisy_layer_forward.1} parent=1 // pred_check
      %p28 = pneg %p27
    $region31: #{noisy_layer_forward.1} parent=1 // pred_check_branch
      %30 = sbr.rel (%p28) target = $region33
    $region32: #{noisy_layer_forward.1} parent=1 // pred_region
      %31 = vst [vmem:[#allocation2] sm:$0xff] 0.0
    $region33: #{noisy_layer_forward.1} parent=1 // pred_fallthru
      _
    %v32 = vld [vmem:[%s0] sm:$0xff]
    %v33 = vld [vmem:[%s4] sm:$0x1]
    %v34 = vld [vmem:[%s1] sm:$0xff]
    %v35 = vld [vmem:[%s1 + $0x8] sm:$0xff]
    %v36 = vld [vmem:[%s1 + $0x10] sm:$0xff]
    %v37 = vld [vmem:[%s1 + $0x18] sm:$0xff]
    %v38 = vld [vmem:[%s1 + $0x20] sm:$0xff]
    %v39 = vld [vmem:[%s1 + $0x28] sm:$0xff]
    %v40 = vld [vmem:[%s1 + $0x30] sm:$0xff]
    %v41 = vld [vmem:[%s1 + $0x38] sm:$0xff]
    %v42 = vld [vmem:[%s1 + $0x40] sm:$0xff]
    %v43 = vld [vmem:[%s1 + $0x48] sm:$0xff]
    %v44 = vld [vmem:[%s1 + $0x50] sm:$0xff]
    %v45 = vld [vmem:[%s1 + $0x58] sm:$0xff]
    %v46 = vld [vmem:[%s1 + $0x60] sm:$0xff]
    %v47 = vld [vmem:[%s1 + $0x68] sm:$0xff]
    %v48 = vld [vmem:[%s1 + $0x70] sm:$0xff]
    %v49 = vld [vmem:[%s1 + $0x78] sm:$0xff]
    %v50 = vld [vmem:[%s3] sm:$0x1]
    %v52 = vperm.slane %v50, 0
    %v54 = vmul.f32 %v32, %v52
    %v55 = vld [vmem:[%s2] sm:$0xff]
    %v56 = vld [vmem:[%s2 + $0x8] sm:$0xff]
    %v57 = vld [vmem:[%s2 + $0x10] sm:$0xff]
    %v58 = vld [vmem:[%s2 + $0x18] sm:$0xff]
    %v59 = vld [vmem:[%s2 + $0x20] sm:$0xff]
    %v60 = vld [vmem:[%s2 + $0x28] sm:$0xff]
    %v61 = vld [vmem:[%s2 + $0x30] sm:$0xff]
    %v62 = vld [vmem:[%s2 + $0x38] sm:$0xff]
    %v63 = vld [vmem:[%s2 + $0x40] sm:$0xff]
    %v64 = vld [vmem:[%s2 + $0x48] sm:$0xff]
    %v65 = vld [vmem:[%s2 + $0x50] sm:$0xff]
    %v66 = vld [vmem:[%s2 + $0x58] sm:$0xff]
    %v67 = vld [vmem:[%s2 + $0x60] sm:$0xff]
    %v68 = vld [vmem:[%s2 + $0x68] sm:$0xff]
    %v69 = vld [vmem:[%s2 + $0x70] sm:$0xff]
    %v70 = vld [vmem:[%s2 + $0x78] sm:$0xff]
    %v71 = vand.u32 %v70, 4294901760
    %72 = vmatpush.xpose.msra.mxu0 %v71
    %v73 = vand.u32 %v69, 4294901760
    %74 = vmatpush.xpose.msra.mxu0 %v73
    %v75 = vand.u32 %v68, 4294901760
    %76 = vmatpush.xpose.msra.mxu0 %v75
    %v77 = vand.u32 %v67, 4294901760
    %78 = vmatpush.xpose.msra.mxu0 %v77
    %v79 = vand.u32 %v66, 4294901760
    %80 = vmatpush.xpose.msra.mxu0 %v79
    %v81 = vand.u32 %v65, 4294901760
    %82 = vmatpush.xpose.msra.mxu0 %v81
    %v83 = vand.u32 %v64, 4294901760
    %84 = vmatpush.xpose.msra.mxu0 %v83
    %v85 = vand.u32 %v63, 4294901760
    %86 = vmatpush.xpose.msra.mxu0 %v85
    %v87 = vand.u32 %v62, 4294901760
    %88 = vmatpush.xpose.msra.mxu0 %v87
    %v89 = vand.u32 %v61, 4294901760
    %90 = vmatpush.xpose.msra.mxu0 %v89
    %v91 = vand.u32 %v60, 4294901760
    %92 = vmatpush.xpose.msra.mxu0 %v91
    %v93 = vand.u32 %v59, 4294901760
    %94 = vmatpush.xpose.msra.mxu0 %v93
    %v95 = vand.u32 %v58, 4294901760
    %96 = vmatpush.xpose.msra.mxu0 %v95
    %v97 = vand.u32 %v57, 4294901760
    %98 = vmatpush.xpose.msra.mxu0 %v97
    %v99 = vand.u32 %v56, 4294901760
    %100 = vmatpush.xpose.msra.mxu0 %v99
    %v101 = vand.u32 %v55, 4294901760
    %102 = vmatpush.xpose.msra.mxu0 %v101
    %v103 = vand.u32 %v54, 4294901760
    %v104 = vsub.f32 %v54, %v103
    %v105 = vand.u32 %v104, 4294901760
    %v106 = vsub.f32 %v104, %v105
    %v107 = vand.u32 %v106, 4294901760
    %108 = vmatmul.f32.gmra.mxu0 %v107
    %v109 = vpop.f32.mrf.mxu0
    %v110 = vadd.f32 0.0, %v109
    %111 = vdwg.mxu0
    %v112 = vand.u32 %v70, 4294901760
    %v113 = vsub.f32 %v70, %v112
    %v114 = vand.u32 %v113, 4294901760
    %v115 = vsub.f32 %v113, %v114
    %v116 = vand.u32 %v115, 4294901760
    %117 = vmatpush.xpose.msra.mxu0 %v116
    %v118 = vand.u32 %v69, 4294901760
    %v119 = vsub.f32 %v69, %v118
    %v120 = vand.u32 %v119, 4294901760
    %v121 = vsub.f32 %v119, %v120
    %v122 = vand.u32 %v121, 4294901760
    %123 = vmatpush.xpose.msra.mxu0 %v122
    %v124 = vand.u32 %v68, 4294901760
    %v125 = vsub.f32 %v68, %v124
    %v126 = vand.u32 %v125, 4294901760
    %v127 = vsub.f32 %v125, %v126
    %v128 = vand.u32 %v127, 4294901760
    %129 = vmatpush.xpose.msra.mxu0 %v128
    %v130 = vand.u32 %v67, 4294901760
    %v131 = vsub.f32 %v67, %v130
    %v132 = vand.u32 %v131, 4294901760
    %v133 = vsub.f32 %v131, %v132
    %v134 = vand.u32 %v133, 4294901760
    %135 = vmatpush.xpose.msra.mxu0 %v134
    %v136 = vand.u32 %v66, 4294901760
    %v137 = vsub.f32 %v66, %v136
    %v138 = vand.u32 %v137, 4294901760
    %v139 = vsub.f32 %v137, %v138
    %v140 = vand.u32 %v139, 4294901760
    %141 = vmatpush.xpose.msra.mxu0 %v140
    %v142 = vand.u32 %v65, 4294901760
    %v143 = vsub.f32 %v65, %v142
    %v144 = vand.u32 %v143, 4294901760
    %v145 = vsub.f32 %v143, %v144
    %v146 = vand.u32 %v145, 4294901760
    %147 = vmatpush.xpose.msra.mxu0 %v146
    %v148 = vand.u32 %v64, 4294901760
    %v149 = vsub.f32 %v64, %v148
    %v150 = vand.u32 %v149, 4294901760
    %v151 = vsub.f32 %v149, %v150
    %v152 = vand.u32 %v151, 4294901760
    %153 = vmatpush.xpose.msra.mxu0 %v152
    %v154 = vand.u32 %v63, 4294901760
    %v155 = vsub.f32 %v63, %v154
    %v156 = vand.u32 %v155, 4294901760
    %v157 = vsub.f32 %v155, %v156
    %v158 = vand.u32 %v157, 4294901760
    %159 = vmatpush.xpose.msra.mxu0 %v158
    %v160 = vand.u32 %v62, 4294901760
    %v161 = vsub.f32 %v62, %v160
    %v162 = vand.u32 %v161, 4294901760
    %v163 = vsub.f32 %v161, %v162
    %v164 = vand.u32 %v163, 4294901760
    %165 = vmatpush.xpose.msra.mxu0 %v164
    %v166 = vand.u32 %v61, 4294901760
    %v167 = vsub.f32 %v61, %v166
    %v168 = vand.u32 %v167, 4294901760
    %v169 = vsub.f32 %v167, %v168
    %v170 = vand.u32 %v169, 4294901760
    %171 = vmatpush.xpose.msra.mxu0 %v170
    %v172 = vand.u32 %v60, 4294901760
    %v173 = vsub.f32 %v60, %v172
    %v174 = vand.u32 %v173, 4294901760
    %v175 = vsub.f32 %v173, %v174
    %v176 = vand.u32 %v175, 4294901760
    %177 = vmatpush.xpose.msra.mxu0 %v176
    %v178 = vand.u32 %v59, 4294901760
    %v179 = vsub.f32 %v59, %v178
    %v180 = vand.u32 %v179, 4294901760
    %v181 = vsub.f32 %v179, %v180
    %v182 = vand.u32 %v181, 4294901760
    %183 = vmatpush.xpose.msra.mxu0 %v182
    %v184 = vand.u32 %v58, 4294901760
    %v185 = vsub.f32 %v58, %v184
    %v186 = vand.u32 %v185, 4294901760
    %v187 = vsub.f32 %v185, %v186
    %v188 = vand.u32 %v187, 4294901760
    %189 = vmatpush.xpose.msra.mxu0 %v188
    %v190 = vand.u32 %v57, 4294901760
    %v191 = vsub.f32 %v57, %v190
    %v192 = vand.u32 %v191, 4294901760
    %v193 = vsub.f32 %v191, %v192
    %v194 = vand.u32 %v193, 4294901760
    %195 = vmatpush.xpose.msra.mxu0 %v194
    %v196 = vand.u32 %v56, 4294901760
    %v197 = vsub.f32 %v56, %v196
    %v198 = vand.u32 %v197, 4294901760
    %v199 = vsub.f32 %v197, %v198
    %v200 = vand.u32 %v199, 4294901760
    %201 = vmatpush.xpose.msra.mxu0 %v200
    %v202 = vand.u32 %v55, 4294901760
    %v203 = vsub.f32 %v55, %v202
    %v204 = vand.u32 %v203, 4294901760
    %v205 = vsub.f32 %v203, %v204
    %v206 = vand.u32 %v205, 4294901760
    %207 = vmatpush.xpose.msra.mxu0 %v206
    %v208 = vand.u32 %v54, 4294901760
    %209 = vmatmul.f32.gmra.mxu0 %v208
    %v210 = vpop.f32.mrf.mxu0
    %v211 = vadd.f32 %v110, %v210
    %212 = vdwg.mxu0
    %v213 = vand.u32 %v70, 4294901760
    %v214 = vsub.f32 %v70, %v213
    %215 = vmatpush.xpose.msra.mxu0 %v214
    %v216 = vand.u32 %v69, 4294901760
    %v217 = vsub.f32 %v69, %v216
    %218 = vmatpush.xpose.msra.mxu0 %v217
    %v219 = vand.u32 %v68, 4294901760
    %v220 = vsub.f32 %v68, %v219
    %221 = vmatpush.xpose.msra.mxu0 %v220
    %v222 = vand.u32 %v67, 4294901760
    %v223 = vsub.f32 %v67, %v222
    %224 = vmatpush.xpose.msra.mxu0 %v223
    %v225 = vand.u32 %v66, 4294901760
    %v226 = vsub.f32 %v66, %v225
    %227 = vmatpush.xpose.msra.mxu0 %v226
    %v228 = vand.u32 %v65, 4294901760
    %v229 = vsub.f32 %v65, %v228
    %230 = vmatpush.xpose.msra.mxu0 %v229
    %v231 = vand.u32 %v64, 4294901760
    %v232 = vsub.f32 %v64, %v231
    %233 = vmatpush.xpose.msra.mxu0 %v232
    %v234 = vand.u32 %v63, 4294901760
    %v235 = vsub.f32 %v63, %v234
    %236 = vmatpush.xpose.msra.mxu0 %v235
    %v237 = vand.u32 %v62, 4294901760
    %v238 = vsub.f32 %v62, %v237
    %239 = vmatpush.xpose.msra.mxu0 %v238
    %v240 = vand.u32 %v61, 4294901760
    %v241 = vsub.f32 %v61, %v240
    %242 = vmatpush.xpose.msra.mxu0 %v241
    %v243 = vand.u32 %v60, 4294901760
    %v244 = vsub.f32 %v60, %v243
    %245 = vmatpush.xpose.msra.mxu0 %v244
    %v246 = vand.u32 %v59, 4294901760
    %v247 = vsub.f32 %v59, %v246
    %248 = vmatpush.xpose.msra.mxu0 %v247
    %v249 = vand.u32 %v58, 4294901760
    %v250 = vsub.f32 %v58, %v249
    %251 = vmatpush.xpose.msra.mxu0 %v250
    %v252 = vand.u32 %v57, 4294901760
    %v253 = vsub.f32 %v57, %v252
    %254 = vmatpush.xpose.msra.mxu0 %v253
    %v255 = vand.u32 %v56, 4294901760
    %v256 = vsub.f32 %v56, %v255
    %257 = vmatpush.xpose.msra.mxu0 %v256
    %v258 = vand.u32 %v55, 4294901760
    %v259 = vsub.f32 %v55, %v258
    %260 = vmatpush.xpose.msra.mxu0 %v259
    %v261 = vand.u32 %v54, 4294901760
    %v262 = vsub.f32 %v54, %v261
    %263 = vmatmul.f32.gmra.mxu0 %v262
    %v264 = vpop.f32.mrf.mxu0
    %v265 = vadd.f32 %v211, %v264
    %266 = vdwg.mxu0
    %v267 = vand.u32 %v70, 4294901760
    %268 = vmatpush.xpose.msra.mxu0 %v267
    %v269 = vand.u32 %v69, 4294901760
    %270 = vmatpush.xpose.msra.mxu0 %v269
    %v271 = vand.u32 %v68, 4294901760
    %272 = vmatpush.xpose.msra.mxu0 %v271
    %v273 = vand.u32 %v67, 4294901760
    %274 = vmatpush.xpose.msra.mxu0 %v273
    %v275 = vand.u32 %v66, 4294901760
    %276 = vmatpush.xpose.msra.mxu0 %v275
    %v277 = vand.u32 %v65, 4294901760
    %278 = vmatpush.xpose.msra.mxu0 %v277
    %v279 = vand.u32 %v64, 4294901760
    %280 = vmatpush.xpose.msra.mxu0 %v279
    %v281 = vand.u32 %v63, 4294901760
    %282 = vmatpush.xpose.msra.mxu0 %v281
    %v283 = vand.u32 %v62, 4294901760
    %284 = vmatpush.xpose.msra.mxu0 %v283
    %v285 = vand.u32 %v61, 4294901760
    %286 = vmatpush.xpose.msra.mxu0 %v285
    %v287 = vand.u32 %v60, 4294901760
    %288 = vmatpush.xpose.msra.mxu0 %v287
    %v289 = vand.u32 %v59, 4294901760
    %290 = vmatpush.xpose.msra.mxu0 %v289
    %v291 = vand.u32 %v58, 4294901760
    %292 = vmatpush.xpose.msra.mxu0 %v291
    %v293 = vand.u32 %v57, 4294901760
    %294 = vmatpush.xpose.msra.mxu0 %v293
    %v295 = vand.u32 %v56, 4294901760
    %296 = vmatpush.xpose.msra.mxu0 %v295
    %v297 = vand.u32 %v55, 4294901760
    %298 = vmatpush.xpose.msra.mxu0 %v297
    %v299 = vand.u32 %v54, 4294901760
    %v300 = vsub.f32 %v54, %v299
    %v301 = vand.u32 %v300, 4294901760
    %302 = vmatmul.f32.gmra.mxu0 %v301
    %v303 = vpop.f32.mrf.mxu0
    %v304 = vadd.f32 %v265, %v303
    %305 = vdwg.mxu0
    %v306 = vand.u32 %v70, 4294901760
    %v307 = vsub.f32 %v70, %v306
    %v308 = vand.u32 %v307, 4294901760
    %309 = vmatpush.xpose.msra.mxu0 %v308
    %v310 = vand.u32 %v69, 4294901760
    %v311 = vsub.f32 %v69, %v310
    %v312 = vand.u32 %v311, 4294901760
    %313 = vmatpush.xpose.msra.mxu0 %v312
    %v314 = vand.u32 %v68, 4294901760
    %v315 = vsub.f32 %v68, %v314
    %v316 = vand.u32 %v315, 4294901760
    %317 = vmatpush.xpose.msra.mxu0 %v316
    %v318 = vand.u32 %v67, 4294901760
    %v319 = vsub.f32 %v67, %v318
    %v320 = vand.u32 %v319, 4294901760
    %321 = vmatpush.xpose.msra.mxu0 %v320
    %v322 = vand.u32 %v66, 4294901760
    %v323 = vsub.f32 %v66, %v322
    %v324 = vand.u32 %v323, 4294901760
    %325 = vmatpush.xpose.msra.mxu0 %v324
    %v326 = vand.u32 %v65, 4294901760
    %v327 = vsub.f32 %v65, %v326
    %v328 = vand.u32 %v327, 4294901760
    %329 = vmatpush.xpose.msra.mxu0 %v328
    %v330 = vand.u32 %v64, 4294901760
    %v331 = vsub.f32 %v64, %v330
    %v332 = vand.u32 %v331, 4294901760
    %333 = vmatpush.xpose.msra.mxu0 %v332
    %v334 = vand.u32 %v63, 4294901760
    %v335 = vsub.f32 %v63, %v334
    %v336 = vand.u32 %v335, 4294901760
    %337 = vmatpush.xpose.msra.mxu0 %v336
    %v338 = vand.u32 %v62, 4294901760
    %v339 = vsub.f32 %v62, %v338
    %v340 = vand.u32 %v339, 4294901760
    %341 = vmatpush.xpose.msra.mxu0 %v340
    %v342 = vand.u32 %v61, 4294901760
    %v343 = vsub.f32 %v61, %v342
    %v344 = vand.u32 %v343, 4294901760
    %345 = vmatpush.xpose.msra.mxu0 %v344
    %v346 = vand.u32 %v60, 4294901760
    %v347 = vsub.f32 %v60, %v346
    %v348 = vand.u32 %v347, 4294901760
    %349 = vmatpush.xpose.msra.mxu0 %v348
    %v350 = vand.u32 %v59, 4294901760
    %v351 = vsub.f32 %v59, %v350
    %v352 = vand.u32 %v351, 4294901760
    %353 = vmatpush.xpose.msra.mxu0 %v352
    %v354 = vand.u32 %v58, 4294901760
    %v355 = vsub.f32 %v58, %v354
    %v356 = vand.u32 %v355, 4294901760
    %357 = vmatpush.xpose.msra.mxu0 %v356
    %v358 = vand.u32 %v57, 4294901760
    %v359 = vsub.f32 %v57, %v358
    %v360 = vand.u32 %v359, 4294901760
    %361 = vmatpush.xpose.msra.mxu0 %v360
    %v362 = vand.u32 %v56, 4294901760
    %v363 = vsub.f32 %v56, %v362
    %v364 = vand.u32 %v363, 4294901760
    %365 = vmatpush.xpose.msra.mxu0 %v364
    %v366 = vand.u32 %v55, 4294901760
    %v367 = vsub.f32 %v55, %v366
    %v368 = vand.u32 %v367, 4294901760
    %369 = vmatpush.xpose.msra.mxu0 %v368
    %v370 = vand.u32 %v54, 4294901760
    %371 = vmatmul.f32.gmra.mxu0 %v370
    %v372 = vpop.f32.mrf.mxu0
    %v373 = vadd.f32 %v304, %v372
    %374 = vdwg.mxu0
    %v375 = vand.u32 %v70, 4294901760
    %376 = vmatpush.xpose.msra.mxu0 %v375
    %v377 = vand.u32 %v69, 4294901760
    %378 = vmatpush.xpose.msra.mxu0 %v377
    %v379 = vand.u32 %v68, 4294901760
    %380 = vmatpush.xpose.msra.mxu0 %v379
    %v381 = vand.u32 %v67, 4294901760
    %382 = vmatpush.xpose.msra.mxu0 %v381
    %v383 = vand.u32 %v66, 4294901760
    %384 = vmatpush.xpose.msra.mxu0 %v383
    %v385 = vand.u32 %v65, 4294901760
    %386 = vmatpush.xpose.msra.mxu0 %v385
    %v387 = vand.u32 %v64, 4294901760
    %388 = vmatpush.xpose.msra.mxu0 %v387
    %v389 = vand.u32 %v63, 4294901760
    %390 = vmatpush.xpose.msra.mxu0 %v389
    %v391 = vand.u32 %v62, 4294901760
    %392 = vmatpush.xpose.msra.mxu0 %v391
    %v393 = vand.u32 %v61, 4294901760
    %394 = vmatpush.xpose.msra.mxu0 %v393
    %v395 = vand.u32 %v60, 4294901760
    %396 = vmatpush.xpose.msra.mxu0 %v395
    %v397 = vand.u32 %v59, 4294901760
    %398 = vmatpush.xpose.msra.mxu0 %v397
    %v399 = vand.u32 %v58, 4294901760
    %400 = vmatpush.xpose.msra.mxu0 %v399
    %v401 = vand.u32 %v57, 4294901760
    %402 = vmatpush.xpose.msra.mxu0 %v401
    %v403 = vand.u32 %v56, 4294901760
    %404 = vmatpush.xpose.msra.mxu0 %v403
    %v405 = vand.u32 %v55, 4294901760
    %406 = vmatpush.xpose.msra.mxu0 %v405
    %v407 = vand.u32 %v54, 4294901760
    %408 = vmatmul.f32.gmra.mxu0 %v407
    %v409 = vpop.f32.mrf.mxu0
    %v410 = vadd.f32 %v373, %v409
    %411 = vdwg.mxu0
    %v413 = vperm.slane %v33, 0
    %v415 = vmul.f32 %v413, %v410
    %v416 = vand.u32 %v49, 4294901760
    %417 = vmatpush.xpose.msra.mxu0 %v416
    %v418 = vand.u32 %v48, 4294901760
    %419 = vmatpush.xpose.msra.mxu0 %v418
    %v420 = vand.u32 %v47, 4294901760
    %421 = vmatpush.xpose.msra.mxu0 %v420
    %v422 = vand.u32 %v46, 4294901760
    %423 = vmatpush.xpose.msra.mxu0 %v422
    %v424 = vand.u32 %v45, 4294901760
    %425 = vmatpush.xpose.msra.mxu0 %v424
    %v426 = vand.u32 %v44, 4294901760
    %427 = vmatpush.xpose.msra.mxu0 %v426
    %v428 = vand.u32 %v43, 4294901760
    %429 = vmatpush.xpose.msra.mxu0 %v428
    %v430 = vand.u32 %v42, 4294901760
    %431 = vmatpush.xpose.msra.mxu0 %v430
    %v432 = vand.u32 %v41, 4294901760
    %433 = vmatpush.xpose.msra.mxu0 %v432
    %v434 = vand.u32 %v40, 4294901760
    %435 = vmatpush.xpose.msra.mxu0 %v434
    %v436 = vand.u32 %v39, 4294901760
    %437 = vmatpush.xpose.msra.mxu0 %v436
    %v438 = vand.u32 %v38, 4294901760
    %439 = vmatpush.xpose.msra.mxu0 %v438
    %v440 = vand.u32 %v37, 4294901760
    %441 = vmatpush.xpose.msra.mxu0 %v440
    %v442 = vand.u32 %v36, 4294901760
    %443 = vmatpush.xpose.msra.mxu0 %v442
    %v444 = vand.u32 %v35, 4294901760
    %445 = vmatpush.xpose.msra.mxu0 %v444
    %v446 = vand.u32 %v34, 4294901760
    %447 = vmatpush.xpose.msra.mxu0 %v446
    %v448 = vand.u32 %v32, 4294901760
    %v449 = vsub.f32 %v32, %v448
    %v450 = vand.u32 %v449, 4294901760
    %v451 = vsub.f32 %v449, %v450
    %v452 = vand.u32 %v451, 4294901760
    %453 = vmatmul.f32.gmra.mxu0 %v452
    %v454 = vpop.f32.mrf.mxu0
    %v455 = vadd.f32 %v415, %v454
    %456 = vdwg.mxu0
    %v457 = vand.u32 %v49, 4294901760
    %v458 = vsub.f32 %v49, %v457
    %v459 = vand.u32 %v458, 4294901760
    %v460 = vsub.f32 %v458, %v459
    %v461 = vand.u32 %v460, 4294901760
    %462 = vmatpush.xpose.msra.mxu0 %v461
    %v463 = vand.u32 %v48, 4294901760
    %v464 = vsub.f32 %v48, %v463
    %v465 = vand.u32 %v464, 4294901760
    %v466 = vsub.f32 %v464, %v465
    %v467 = vand.u32 %v466, 4294901760
    %468 = vmatpush.xpose.msra.mxu0 %v467
    %v469 = vand.u32 %v47, 4294901760
    %v470 = vsub.f32 %v47, %v469
    %v471 = vand.u32 %v470, 4294901760
    %v472 = vsub.f32 %v470, %v471
    %v473 = vand.u32 %v472, 4294901760
    %474 = vmatpush.xpose.msra.mxu0 %v473
    %v475 = vand.u32 %v46, 4294901760
    %v476 = vsub.f32 %v46, %v475
    %v477 = vand.u32 %v476, 4294901760
    %v478 = vsub.f32 %v476, %v477
    %v479 = vand.u32 %v478, 4294901760
    %480 = vmatpush.xpose.msra.mxu0 %v479
    %v481 = vand.u32 %v45, 4294901760
    %v482 = vsub.f32 %v45, %v481
    %v483 = vand.u32 %v482, 4294901760
    %v484 = vsub.f32 %v482, %v483
    %v485 = vand.u32 %v484, 4294901760
    %486 = vmatpush.xpose.msra.mxu0 %v485
    %v487 = vand.u32 %v44, 4294901760
    %v488 = vsub.f32 %v44, %v487
    %v489 = vand.u32 %v488, 4294901760
    %v490 = vsub.f32 %v488, %v489
    %v491 = vand.u32 %v490, 4294901760
    %492 = vmatpush.xpose.msra.mxu0 %v491
    %v493 = vand.u32 %v43, 4294901760
    %v494 = vsub.f32 %v43, %v493
    %v495 = vand.u32 %v494, 4294901760
    %v496 = vsub.f32 %v494, %v495
    %v497 = vand.u32 %v496, 4294901760
    %498 = vmatpush.xpose.msra.mxu0 %v497
    %v499 = vand.u32 %v42, 4294901760
    %v500 = vsub.f32 %v42, %v499
    %v501 = vand.u32 %v500, 4294901760
    %v502 = vsub.f32 %v500, %v501
    %v503 = vand.u32 %v502, 4294901760
    %504 = vmatpush.xpose.msra.mxu0 %v503
    %v505 = vand.u32 %v41, 4294901760
    %v506 = vsub.f32 %v41, %v505
    %v507 = vand.u32 %v506, 4294901760
    %v508 = vsub.f32 %v506, %v507
    %v509 = vand.u32 %v508, 4294901760
    %510 = vmatpush.xpose.msra.mxu0 %v509
    %v511 = vand.u32 %v40, 4294901760
    %v512 = vsub.f32 %v40, %v511
    %v513 = vand.u32 %v512, 4294901760
    %v514 = vsub.f32 %v512, %v513
    %v515 = vand.u32 %v514, 4294901760
    %516 = vmatpush.xpose.msra.mxu0 %v515
    %v517 = vand.u32 %v39, 4294901760
    %v518 = vsub.f32 %v39, %v517
    %v519 = vand.u32 %v518, 4294901760
    %v520 = vsub.f32 %v518, %v519
    %v521 = vand.u32 %v520, 4294901760
    %522 = vmatpush.xpose.msra.mxu0 %v521
    %v523 = vand.u32 %v38, 4294901760
    %v524 = vsub.f32 %v38, %v523
    %v525 = vand.u32 %v524, 4294901760
    %v526 = vsub.f32 %v524, %v525
    %v527 = vand.u32 %v526, 4294901760
    %528 = vmatpush.xpose.msra.mxu0 %v527
    %v529 = vand.u32 %v37, 4294901760
    %v530 = vsub.f32 %v37, %v529
    %v531 = vand.u32 %v530, 4294901760
    %v532 = vsub.f32 %v530, %v531
    %v533 = vand.u32 %v532, 4294901760
    %534 = vmatpush.xpose.msra.mxu0 %v533
    %v535 = vand.u32 %v36, 4294901760
    %v536 = vsub.f32 %v36, %v535
    %v537 = vand.u32 %v536, 4294901760
    %v538 = vsub.f32 %v536, %v537
    %v539 = vand.u32 %v538, 4294901760
    %540 = vmatpush.xpose.msra.mxu0 %v539
    %v541 = vand.u32 %v35, 4294901760
    %v542 = vsub.f32 %v35, %v541
    %v543 = vand.u32 %v542, 4294901760
    %v544 = vsub.f32 %v542, %v543
    %v545 = vand.u32 %v544, 4294901760
    %546 = vmatpush.xpose.msra.mxu0 %v545
    %v547 = vand.u32 %v34, 4294901760
    %v548 = vsub.f32 %v34, %v547
    %v549 = vand.u32 %v548, 4294901760
    %v550 = vsub.f32 %v548, %v549
    %v551 = vand.u32 %v550, 4294901760
    %552 = vmatpush.xpose.msra.mxu0 %v551
    %v553 = vand.u32 %v32, 4294901760
    %554 = vmatmul.f32.gmra.mxu0 %v553
    %v555 = vpop.f32.mrf.mxu0
    %v556 = vadd.f32 %v455, %v555
    %557 = vdwg.mxu0
    %v558 = vand.u32 %v49, 4294901760
    %v559 = vsub.f32 %v49, %v558
    %560 = vmatpush.xpose.msra.mxu0 %v559
    %v561 = vand.u32 %v48, 4294901760
    %v562 = vsub.f32 %v48, %v561
    %563 = vmatpush.xpose.msra.mxu0 %v562
    %v564 = vand.u32 %v47, 4294901760
    %v565 = vsub.f32 %v47, %v564
    %566 = vmatpush.xpose.msra.mxu0 %v565
    %v567 = vand.u32 %v46, 4294901760
    %v568 = vsub.f32 %v46, %v567
    %569 = vmatpush.xpose.msra.mxu0 %v568
    %v570 = vand.u32 %v45, 4294901760
    %v571 = vsub.f32 %v45, %v570
    %572 = vmatpush.xpose.msra.mxu0 %v571
    %v573 = vand.u32 %v44, 4294901760
    %v574 = vsub.f32 %v44, %v573
    %575 = vmatpush.xpose.msra.mxu0 %v574
    %v576 = vand.u32 %v43, 4294901760
    %v577 = vsub.f32 %v43, %v576
    %578 = vmatpush.xpose.msra.mxu0 %v577
    %v579 = vand.u32 %v42, 4294901760
    %v580 = vsub.f32 %v42, %v579
    %581 = vmatpush.xpose.msra.mxu0 %v580
    %v582 = vand.u32 %v41, 4294901760
    %v583 = vsub.f32 %v41, %v582
    %584 = vmatpush.xpose.msra.mxu0 %v583
    %v585 = vand.u32 %v40, 4294901760
    %v586 = vsub.f32 %v40, %v585
    %587 = vmatpush.xpose.msra.mxu0 %v586
    %v588 = vand.u32 %v39, 4294901760
    %v589 = vsub.f32 %v39, %v588
    %590 = vmatpush.xpose.msra.mxu0 %v589
    %v591 = vand.u32 %v38, 4294901760
    %v592 = vsub.f32 %v38, %v591
    %593 = vmatpush.xpose.msra.mxu0 %v592
    %v594 = vand.u32 %v37, 4294901760
    %v595 = vsub.f32 %v37, %v594
    %596 = vmatpush.xpose.msra.mxu0 %v595
    %v597 = vand.u32 %v36, 4294901760
    %v598 = vsub.f32 %v36, %v597
    %599 = vmatpush.xpose.msra.mxu0 %v598
    %v600 = vand.u32 %v35, 4294901760
    %v601 = vsub.f32 %v35, %v600
    %602 = vmatpush.xpose.msra.mxu0 %v601
    %v603 = vand.u32 %v34, 4294901760
    %v604 = vsub.f32 %v34, %v603
    %605 = vmatpush.xpose.msra.mxu0 %v604
    %v606 = vand.u32 %v32, 4294901760
    %v607 = vsub.f32 %v32, %v606
    %608 = vmatmul.f32.gmra.mxu0 %v607
    %v609 = vpop.f32.mrf.mxu0
    %v610 = vadd.f32 %v556, %v609
    %611 = vdwg.mxu0
    %v612 = vand.u32 %v49, 4294901760
    %613 = vmatpush.xpose.msra.mxu0 %v612
    %v614 = vand.u32 %v48, 4294901760
    %615 = vmatpush.xpose.msra.mxu0 %v614
    %v616 = vand.u32 %v47, 4294901760
    %617 = vmatpush.xpose.msra.mxu0 %v616
    %v618 = vand.u32 %v46, 4294901760
    %619 = vmatpush.xpose.msra.mxu0 %v618
    %v620 = vand.u32 %v45, 4294901760
    %621 = vmatpush.xpose.msra.mxu0 %v620
    %v622 = vand.u32 %v44, 4294901760
    %623 = vmatpush.xpose.msra.mxu0 %v622
    %v624 = vand.u32 %v43, 4294901760
    %625 = vmatpush.xpose.msra.mxu0 %v624
    %v626 = vand.u32 %v42, 4294901760
    %627 = vmatpush.xpose.msra.mxu0 %v626
    %v628 = vand.u32 %v41, 4294901760
    %629 = vmatpush.xpose.msra.mxu0 %v628
    %v630 = vand.u32 %v40, 4294901760
    %631 = vmatpush.xpose.msra.mxu0 %v630
    %v632 = vand.u32 %v39, 4294901760
    %633 = vmatpush.xpose.msra.mxu0 %v632
    %v634 = vand.u32 %v38, 4294901760
    %635 = vmatpush.xpose.msra.mxu0 %v634
    %v636 = vand.u32 %v37, 4294901760
    %637 = vmatpush.xpose.msra.mxu0 %v636
    %v638 = vand.u32 %v36, 4294901760
    %639 = vmatpush.xpose.msra.mxu0 %v638
    %v640 = vand.u32 %v35, 4294901760
    %641 = vmatpush.xpose.msra.mxu0 %v640
    %v642 = vand.u32 %v34, 4294901760
    %643 = vmatpush.xpose.msra.mxu0 %v642
    %v644 = vand.u32 %v32, 4294901760
    %v645 = vsub.f32 %v32, %v644
    %v646 = vand.u32 %v645, 4294901760
    %647 = vmatmul.f32.gmra.mxu0 %v646
    %v648 = vpop.f32.mrf.mxu0
    %v649 = vadd.f32 %v610, %v648
    %650 = vdwg.mxu0
    %v651 = vand.u32 %v49, 4294901760
    %v652 = vsub.f32 %v49, %v651
    %v653 = vand.u32 %v652, 4294901760
    %654 = vmatpush.xpose.msra.mxu0 %v653
    %v655 = vand.u32 %v48, 4294901760
    %v656 = vsub.f32 %v48, %v655
    %v657 = vand.u32 %v656, 4294901760
    %658 = vmatpush.xpose.msra.mxu0 %v657
    %v659 = vand.u32 %v47, 4294901760
    %v660 = vsub.f32 %v47, %v659
    %v661 = vand.u32 %v660, 4294901760
    %662 = vmatpush.xpose.msra.mxu0 %v661
    %v663 = vand.u32 %v46, 4294901760
    %v664 = vsub.f32 %v46, %v663
    %v665 = vand.u32 %v664, 4294901760
    %666 = vmatpush.xpose.msra.mxu0 %v665
    %v667 = vand.u32 %v45, 4294901760
    %v668 = vsub.f32 %v45, %v667
    %v669 = vand.u32 %v668, 4294901760
    %670 = vmatpush.xpose.msra.mxu0 %v669
    %v671 = vand.u32 %v44, 4294901760
    %v672 = vsub.f32 %v44, %v671
    %v673 = vand.u32 %v672, 4294901760
    %674 = vmatpush.xpose.msra.mxu0 %v673
    %v675 = vand.u32 %v43, 4294901760
    %v676 = vsub.f32 %v43, %v675
    %v677 = vand.u32 %v676, 4294901760
    %678 = vmatpush.xpose.msra.mxu0 %v677
    %v679 = vand.u32 %v42, 4294901760
    %v680 = vsub.f32 %v42, %v679
    %v681 = vand.u32 %v680, 4294901760
    %682 = vmatpush.xpose.msra.mxu0 %v681
    %v683 = vand.u32 %v41, 4294901760
    %v684 = vsub.f32 %v41, %v683
    %v685 = vand.u32 %v684, 4294901760
    %686 = vmatpush.xpose.msra.mxu0 %v685
    %v687 = vand.u32 %v40, 4294901760
    %v688 = vsub.f32 %v40, %v687
    %v689 = vand.u32 %v688, 4294901760
    %690 = vmatpush.xpose.msra.mxu0 %v689
    %v691 = vand.u32 %v39, 4294901760
    %v692 = vsub.f32 %v39, %v691
    %v693 = vand.u32 %v692, 4294901760
    %694 = vmatpush.xpose.msra.mxu0 %v693
    %v695 = vand.u32 %v38, 4294901760
    %v696 = vsub.f32 %v38, %v695
    %v697 = vand.u32 %v696, 4294901760
    %698 = vmatpush.xpose.msra.mxu0 %v697
    %v699 = vand.u32 %v37, 4294901760
    %v700 = vsub.f32 %v37, %v699
    %v701 = vand.u32 %v700, 4294901760
    %702 = vmatpush.xpose.msra.mxu0 %v701
    %v703 = vand.u32 %v36, 4294901760
    %v704 = vsub.f32 %v36, %v703
    %v705 = vand.u32 %v704, 4294901760
    %706 = vmatpush.xpose.msra.mxu0 %v705
    %v707 = vand.u32 %v35, 4294901760
    %v708 = vsub.f32 %v35, %v707
    %v709 = vand.u32 %v708, 4294901760
    %710 = vmatpush.xpose.msra.mxu0 %v709
    %v711 = vand.u32 %v34, 4294901760
    %v712 = vsub.f32 %v34, %v711
    %v713 = vand.u32 %v712, 4294901760
    %714 = vmatpush.xpose.msra.mxu0 %v713
    %v715 = vand.u32 %v32, 4294901760
    %716 = vmatmul.f32.gmra.mxu0 %v715
    %v717 = vpop.f32.mrf.mxu0
    %v718 = vadd.f32 %v649, %v717
    %719 = vdwg.mxu0
    %v720 = vand.u32 %v49, 4294901760
    %721 = vmatpush.xpose.msra.mxu0 %v720
    %v722 = vand.u32 %v48, 4294901760
    %723 = vmatpush.xpose.msra.mxu0 %v722
    %v724 = vand.u32 %v47, 4294901760
    %725 = vmatpush.xpose.msra.mxu0 %v724
    %v726 = vand.u32 %v46, 4294901760
    %727 = vmatpush.xpose.msra.mxu0 %v726
    %v728 = vand.u32 %v45, 4294901760
    %729 = vmatpush.xpose.msra.mxu0 %v728
    %v730 = vand.u32 %v44, 4294901760
    %731 = vmatpush.xpose.msra.mxu0 %v730
    %v732 = vand.u32 %v43, 4294901760
    %733 = vmatpush.xpose.msra.mxu0 %v732
    %v734 = vand.u32 %v42, 4294901760
    %735 = vmatpush.xpose.msra.mxu0 %v734
    %v736 = vand.u32 %v41, 4294901760
    %737 = vmatpush.xpose.msra.mxu0 %v736
    %v738 = vand.u32 %v40, 4294901760
    %739 = vmatpush.xpose.msra.mxu0 %v738
    %v740 = vand.u32 %v39, 4294901760
    %741 = vmatpush.xpose.msra.mxu0 %v740
    %v742 = vand.u32 %v38, 4294901760
    %743 = vmatpush.xpose.msra.mxu0 %v742
    %v744 = vand.u32 %v37, 4294901760
    %745 = vmatpush.xpose.msra.mxu0 %v744
    %v746 = vand.u32 %v36, 4294901760
    %747 = vmatpush.xpose.msra.mxu0 %v746
    %v748 = vand.u32 %v35, 4294901760
    %749 = vmatpush.xpose.msra.mxu0 %v748
    %v750 = vand.u32 %v34, 4294901760
    %751 = vmatpush.xpose.msra.mxu0 %v750
    %v752 = vand.u32 %v32, 4294901760
    %753 = vmatmul.f32.gmra.mxu0 %v752
    %v754 = vpop.f32.mrf.mxu0
    %v755 = vadd.f32 %v718, %v754
    %756 = vdwg.mxu0
    %v757 = vld [vmem:[#allocation2] sm:$0xff]
    %v758 = vadd.f32 %v757, %v755
    %759 = vst [vmem:[#allocation2] sm:$0xff] %v758
    // Predicated region
    $region34: #{noisy_layer_forward.1} parent=1 // pred_check
      %p760 = pneg %p27
    $region35: #{noisy_layer_forward.1} parent=1 // pred_check_branch
      %762 = sbr.rel (%p760) target = $region37
    $region36: #{noisy_layer_forward.1} parent=1 // pred_region
      %v763 = vld [vmem:[%s5] sm:$0x1]
      %v764 = vld [vmem:[%s6] sm:$0x1]
      %v765 = vmul.f32 %v764, %v33
      %v766 = vadd.f32 %v763, %v765
      %v767 = vld [vmem:[#allocation2] sm:$0xff]
      %v769 = vperm.slane %v766, 0
      %v771 = vadd.f32 %v767, %v769
      %772 = vst [vmem:[#allocation3] sm:$0xff] %v771
    $region37: #{noisy_layer_forward.1} parent=1 // pred_fallthru
      _
    // Predicated region
    $region38: #{noisy_layer_forward.1} parent=1 // pred_check
      _
    $region39: #{noisy_layer_forward.1} parent=1 // pred_check_branch
      %774 = sbr.rel (0) target = $region41
    $region40: #{noisy_layer_forward.1} parent=1 // pred_region
      %776 = vsyncadd [#allocation4], 0
      %s778 = sshll.u32 [#allocation3], 4
      %s779 = int_to_ptr.vmem [resolvable:$true] %s778
      %s780 = sshll.u32 %s7, 4
      %s781 = int_to_ptr.hbm [resolvable:$true] %s780
      %783 = dma.vmem_to_hbm [thread:$0]  %s779, 128, %s781, [#allocation4]
    $region41: #{noisy_layer_forward.1} parent=1 // pred_fallthru
      _
    // Predicated region
    $region42: #{noisy_layer_forward.1} parent=1 // pred_check
      _
    $region43: #{noisy_layer_forward.1} parent=1 // pred_check_branch
      %785 = sbr.rel (0) target = $region45
    $region44: #{noisy_layer_forward.1} parent=1 // pred_region
      %787 = dma.done [#allocation4], 128
    $region45: #{noisy_layer_forward.1} parent=1 // pred_fallthru
      _
    %788 = vsyncpa [#allocation4], 1

</llo_original>
